<compile_context>
chip_gen: v7x
topology: tpu7x:2x2x1
jax: 0.10.0
libtpu: 0.0.40
codegen_flags: <defaults>
</compile_context>

<pallas_src>
import functools

import jax
import jax.numpy as jnp
from jax.experimental import pallas as pl
from jax.experimental.pallas import tpu as pltpu

# Rows per grid step.  Padded-layout VMEM cost (f32, 128-lane padding):
#   x block:  tb * 128 lanes * 4 B = 512 B / row
#   out block: tb * 128 lanes * 4 B = 512 B / row
#   double-buffered: ~2 KiB / row  ->  tb = 8192  ~= 16 MiB  (< 48 MiB limit)
_TILE_B = 8192
_VMEM_LIMIT_BYTES = 48 << 20  # > 16 MiB needed; < v7x's 64 MiB physical VMEM


def _net1_kernel(x_ref, w_ref, b_ref, o_ref):
    # Single fused matmul + bias: (tb, 8) @ (8, num_class) + (1, num_class).
    o_ref[...] = (
        jnp.dot(x_ref[...], w_ref[...], preferred_element_type=jnp.float32)
        + b_ref[...]
    )


def fuse_net1_params(w1, b1, w2, b2):
    """Fold fc2(fc1(x)) into one affine map  y = x @ W + b.

    w1: (4, 8)  PyTorch (out, in) layout;  b1: (4,)
    w2: (num_class, 4);                    b2: (num_class,)
    Returns W: (8, num_class), b: (1, num_class).  Do this ONCE at init.
    """
    w1_t = jnp.asarray(w1, jnp.float32).T              # (8, 4)
    w2_t = jnp.asarray(w2, jnp.float32).T              # (4, num_class)
    W = w1_t @ w2_t                                    # (8, num_class)
    b = jnp.asarray(b1, jnp.float32) @ w2_t + jnp.asarray(b2, jnp.float32)
    return W, b.reshape(1, -1)


def _choose_tile(B, tile_b):
    """Pick (tb, n_steps): full-extent block for small B, else an even number
    of multiple-of-8 batch tiles so v7x's two TensorCores split the grid."""
    if B <= tile_b:
        return B, 1
    n = pl.cdiv(B, tile_b)
    if n % 2 == 1:            # even grid length >= 2 for megacore splitting
        n += 1
    tb = -(-B // n)           # cdiv
    tb = -(-tb // 8) * 8      # round up to sublane multiple (8)
    n = -(-B // tb)
    return tb, n


@functools.partial(jax.jit, static_argnames=("tile_b",))
def net1_forward_fused(x, W, b, *, tile_b=_TILE_B):
    """x: (B, 8) float32; W: (8, num_class); b: (1, num_class)."""
    x = jnp.asarray(x, jnp.float32)
    B, K = x.shape
    num_class = W.shape[1]

    tb, n_steps = _choose_tile(B, tile_b)

    cost = pl.CostEstimate(
        flops=2 * B * K * num_class,
        transcendentals=0,
        bytes_accessed=4 * (B * K + K * num_class + num_class + B * num_class),
    )

    return pl.pallas_call(
        _net1_kernel,
        out_shape=jax.ShapeDtypeStruct((B, num_class), jnp.float32),
        grid=(n_steps,),
        in_specs=[
            pl.BlockSpec((tb, K), lambda i: (i, 0)),          # x tile
            pl.BlockSpec(W.shape, lambda i: (0, 0)),          # fused weight (resident)
            pl.BlockSpec(b.shape, lambda i: (0, 0)),          # fused bias   (resident)
        ],
        out_specs=pl.BlockSpec((tb, num_class), lambda i: (i, 0)),
        compiler_params=pltpu.CompilerParams(
            dimension_semantics=("parallel",),   # v7x: both TCs share the batch
            vmem_limit_bytes=_VMEM_LIMIT_BYTES,
        ),
        cost_estimate=cost,
    )(x, W, b)


def net1_forward(x, w1, b1, w2, b2):
    """Convenience path matching the original signature (fuses every call)."""
    W, b = fuse_net1_params(w1, b1, w2, b2)
    return net1_forward_fused(x, W, b)


def _init_linear(key, out_features, in_features):
    # Deterministic PyTorch-style init: U(-1/sqrt(fan_in), 1/sqrt(fan_in)).
    kw, kb = jax.random.split(key)
    bound = 1.0 / jnp.sqrt(jnp.float32(in_features))
    w = jax.random.uniform(kw, (out_features, in_features),
                           jnp.float32, -bound, bound)
    b = jax.random.uniform(kb, (out_features,), jnp.float32, -bound, bound)
    return w, b


if __name__ == "__main__":
    key = jax.random.PRNGKey(0)
    k_x, k_fc1, k_fc2, k_fc3, k_big = jax.random.split(key, 5)

    batch = 8
    num_class = 10

    # Parameters (fc3 exists in __init__ but is unused by forward).
    w1, b1 = _init_linear(k_fc1, 4, 8)          # fc1: Linear(8, 4)
    w2, b2 = _init_linear(k_fc2, num_class, 4)  # fc2: Linear(4, 10)
    _w3, _b3 = _init_linear(k_fc3, 4, 8)        # fc3: unused in forward

    # Fuse once at init (intended usage pattern).
    W, b = fuse_net1_params(w1, b1, w2, b2)

    # --- small batch (matches the module's toy scale): single full-extent block ---
    x = jax.random.normal(k_x, (batch, 8), jnp.float32)
    out = jax.block_until_ready(net1_forward_fused(x, W, b))
    ref = (x @ w1.T + b1) @ w2.T + b2
    assert out.shape == (batch, num_class)
    assert jnp.allclose(out, ref, atol=1e-5, rtol=1e-5)

    # --- larger batch: exercises the multi-tile, even-grid, pipelined path ---
    B_big = 20000                                   # -> 4 tiles of 5000 rows
    x_big = jax.random.normal(k_big, (B_big, 8), jnp.float32)
    out_big = jax.block_until_ready(net1_forward_fused(x_big, W, b))
    ref_big = (x_big @ w1.T + b1) @ w2.T + b2
    assert out_big.shape == (B_big, num_class)
    assert jnp.allclose(out_big, ref_big, atol=1e-5, rtol=1e-5)

    print("KERNEL_OK")
</pallas_src>

<mosaic_0001>
module attributes {stable_mosaic.version = 11 : i64} {
  func.func @_net1_kernel(%arg0: i32, %arg1: memref<8x8xf32, #tpu.memory_space<vmem>>, %arg2: memref<8x10xf32, #tpu.memory_space<vmem>>, %arg3: memref<1x10xf32, #tpu.memory_space<vmem>>, %arg4: memref<8x10xf32, #tpu.memory_space<vmem>>) attributes {dimension_semantics = [#tpu.dimension_semantics<parallel>], iteration_bounds = array<i64: 1>, scalar_prefetch = 0 : i64, scratch_operands = 0 : i64, tpu.core_type = #tpu.core_type<tc>, window_params = [{transform_indices = @transform_0, window_bounds = array<i64: 8, 8>}, {pipeline_mode = #tpu.pipeline_mode<synchronous>, transform_indices = @transform_1, window_bounds = array<i64: 8, 10>}, {pipeline_mode = #tpu.pipeline_mode<synchronous>, transform_indices = @transform_2, window_bounds = array<i64: 1, 10>}, {transform_indices = @transform_3, window_bounds = array<i64: 8, 10>}]} {
    %c0 = arith.constant 0 : index
    %c0_0 = arith.constant 0 : index
    %0 = vector.load %arg1[%c0, %c0_0] : memref<8x8xf32, #tpu.memory_space<vmem>>, vector<8x8xf32>
    %c0_1 = arith.constant 0 : index
    %c0_2 = arith.constant 0 : index
    %1 = vector.load %arg2[%c0_1, %c0_2] : memref<8x10xf32, #tpu.memory_space<vmem>>, vector<8x10xf32>
    %cst = arith.constant dense<0.000000e+00> : vector<8x10xf32>
    %2 = tpu.matmul %0, %1, %cst {dimension_numbers = #tpu.dot_dimension_numbers<[1], [0], [0], [1], [0, 0, 1, 1], [], []>} : vector<8x8xf32>, vector<8x10xf32>, vector<8x10xf32> -> vector<8x10xf32>
    %c0_3 = arith.constant 0 : index
    %c0_4 = arith.constant 0 : index
    %3 = vector.load %arg3[%c0_3, %c0_4] : memref<1x10xf32, #tpu.memory_space<vmem>>, vector<1x10xf32>
    %4 = vector.broadcast %3 : vector<1x10xf32> to vector<8x10xf32>
    %5 = arith.addf %2, %4 : vector<8x10xf32>
    %c0_5 = arith.constant 0 : index
    %c0_6 = arith.constant 0 : index
    %6 = vector.load %arg4[%c0_5, %c0_6] : memref<8x10xf32, #tpu.memory_space<vmem>>, vector<8x10xf32>
    tpu.vector_store %arg4[%c0_5, %c0_6], %5 {strides = array<i32>} : memref<8x10xf32, #tpu.memory_space<vmem>>, vector<8x10xf32>,
    return
  }
  func.func @transform_0(%arg0: i32) -> (i32, i32) {
    %c0_i32 = arith.constant 0 : i32
    %c0_i32_0 = arith.constant 0 : i32
    return %arg0, %c0_i32 : i32, i32
  }
  func.func @transform_1(%arg0: i32) -> (i32, i32) {
    %c0_i32 = arith.constant 0 : i32
    %c0_i32_0 = arith.constant 0 : i32
    %c0_i32_1 = arith.constant 0 : i32
    return %c0_i32, %c0_i32_0 : i32, i32
  }
  func.func @transform_2(%arg0: i32) -> (i32, i32) {
    %c0_i32 = arith.constant 0 : i32
    %c0_i32_0 = arith.constant 0 : i32
    %c0_i32_1 = arith.constant 0 : i32
    return %c0_i32, %c0_i32_0 : i32, i32
  }
  func.func @transform_3(%arg0: i32) -> (i32, i32) {
    %c0_i32 = arith.constant 0 : i32
    %c0_i32_0 = arith.constant 0 : i32
    return %arg0, %c0_i32 : i32, i32
  }
}

</mosaic_0001>

<llo_original>
// kernel: net1_forward_fused.1
$region0: #{net1_forward_fused.1}
  #allocation0 [shape = 'u32[]', space=smem, size = 0x4, offset = 0x4, fixed_abs, tag = 'smem constant byte address 0x4 - core index']
  #allocation1 [shape = 'u32[144,128]{1,0:T(1,128)}', space=vmem, size = 0x12000, scoped, tag = 'internal scratch']
  %s0 = inlined_call_operand.hbm [shape: f32[8,8], index: 0, kind: input, shape index: {}]
  %s1 = inlined_call_operand.hbm [shape: f32[8,10], index: 1, kind: input, shape index: {}]
  %s2 = inlined_call_operand.vmem [shape: f32[1,10], index: 2, kind: input, shape index: {}]
  %s3 = inlined_call_operand.hbm [shape: f32[8,10], index: 3, kind: output, shape index: {}]
  %s4 = sld [smem:[#allocation0]]
  $region30: #{net1_forward_fused.1} parent=0
    _
  %s6 = ssub.s32 1, %s4
  %s7 = scalar_select 0, %s6, %s4
  $region1: #{net1_forward_fused.1} parent=0
    #allocation2 [shape = 'u8[4096]{0}', space=vmem, size = 0x1000, scoped, tag = 'input window, operand 0, single buffered']
    #allocation3 [shape = 's32[1]{0}', space=sflag, size = 0x4, scoped, tag = 'scoped memory for net1_forward_fused.1']
    #allocation4 [shape = 's32[1]{0}', space=sflag, size = 0x4, scoped, tag = 'scoped memory for net1_forward_fused.1']
    #allocation5 [shape = 'u8[4096]{0}', space=vmem, size = 0x1000, scoped, tag = 'input window, operand 1, single buffered']
    #allocation6 [shape = 's32[1]{0}', space=sflag, size = 0x4, scoped, tag = 'scoped memory for net1_forward_fused.1']
    #allocation7 [shape = 'u8[4096]{0}', space=vmem, size = 0x1000, scoped, tag = 'output window, operand 0, single buffered']
    %8 = vsyncpa [#allocation3], 0
    %9 = vsyncpa [#allocation6], 0
    %10 = vsyncpa [#allocation4], 0
    // Predicated region
    $region2: #{net1_forward_fused.1} parent=1 // pred_check
      _
    $region3: #{net1_forward_fused.1} parent=1 // pred_check_branch
      %12 = sbr.rel (0) target = $region5
    $region4: #{net1_forward_fused.1} parent=1 // pred_region
      %s14 = ssub.s32 128, 128
      %15 = vsyncadd [#allocation3], %s14
      %s17 = sshll.u32 [#allocation2], 4
      %s18 = int_to_ptr.vmem [resolvable:$true] %s17
      %20 = dma.hbm_to_vmem [thread:$0]  %s0, 128, %s18, [#allocation3]
    $region5: #{net1_forward_fused.1} parent=1 // pred_fallthru
      _
    // Predicated region
    $region6: #{net1_forward_fused.1} parent=1 // pred_check
      _
    $region7: #{net1_forward_fused.1} parent=1 // pred_check_branch
      %22 = sbr.rel (0) target = $region9
    $region8: #{net1_forward_fused.1} parent=1 // pred_region
      %s24 = ssub.s32 128, 128
      %25 = vsyncadd [#allocation6], %s24
      %s27 = sshll.u32 [#allocation5], 4
      %s28 = int_to_ptr.vmem [resolvable:$true] %s27
      %30 = dma.hbm_to_vmem [thread:$0]  %s1, 128, %s28, [#allocation6]
    $region9: #{net1_forward_fused.1} parent=1 // pred_fallthru
      _
    // Predicated region
    $region10: #{net1_forward_fused.1} parent=1 // pred_check
      _
    $region11: #{net1_forward_fused.1} parent=1 // pred_check_branch
      %32 = sbr.rel (0) target = $region13
    $region12: #{net1_forward_fused.1} parent=1 // pred_region
      _
    $region13: #{net1_forward_fused.1} parent=1 // pred_fallthru
      _
    // Predicated region
    $region14: #{net1_forward_fused.1} parent=1 // pred_check
      _
    $region15: #{net1_forward_fused.1} parent=1 // pred_check_branch
      %34 = sbr.rel (0) target = $region17
    $region16: #{net1_forward_fused.1} parent=1 // pred_region
      %35 = dma.done [#allocation3], 128
    $region17: #{net1_forward_fused.1} parent=1 // pred_fallthru
      _
    // Predicated region
    $region18: #{net1_forward_fused.1} parent=1 // pred_check
      _
    $region19: #{net1_forward_fused.1} parent=1 // pred_check_branch
      %37 = sbr.rel (0) target = $region21
    $region20: #{net1_forward_fused.1} parent=1 // pred_region
      %38 = dma.done [#allocation6], 128
    $region21: #{net1_forward_fused.1} parent=1 // pred_fallthru
      _
    %v39 = vld [vmem:[#allocation2] sm:$0xff]
    %v40 = vld [vmem:[#allocation5] sm:$0xff]
    %v41 = vld [vmem:[%s2] sm:$0x1]
    %v43 = vlaneseq
    %v44 = vshrl.u32 %v43, 7
    %v45 = vsub.s32 0, %v44
    %v46 = vrot.slane %v41, %v45
    %vm48 = vcmask 64512
    %v50 = vsel %vm48, %v39, 0
    %52 = vmatprep.subr.mxu0 0.0
    %53 = vmatpush1.msra.mxu0 %v40
    %54 = vmatprep.subr.mxu0 0.0
    %55 = vmatpush1.msra.mxu0 0.0
    %56 = vmatprep.subr.mxu0 0.0
    %57 = vmatpush1.msra.mxu0 0.0
    %58 = vmatprep.subr.mxu0 0.0
    %59 = vmatpush1.msra.mxu0 0.0
    %60 = vmatprep.subr.mxu0 0.0
    %61 = vmatpush1.msra.mxu0 0.0
    %62 = vmatprep.subr.mxu0 0.0
    %63 = vmatpush1.msra.mxu0 0.0
    %64 = vmatprep.subr.mxu0 0.0
    %65 = vmatpush1.msra.mxu0 0.0
    %66 = vmatprep.subr.mxu0 0.0
    %67 = vmatpush1.msra.mxu0 0.0
    %68 = vmatprep.subr.mxu0 0.0
    %69 = vmatpush1.msra.mxu0 0.0
    %70 = vmatprep.subr.mxu0 0.0
    %71 = vmatpush1.msra.mxu0 0.0
    %72 = vmatprep.subr.mxu0 0.0
    %73 = vmatpush1.msra.mxu0 0.0
    %74 = vmatprep.subr.mxu0 0.0
    %75 = vmatpush1.msra.mxu0 0.0
    %76 = vmatprep.subr.mxu0 0.0
    %77 = vmatpush1.msra.mxu0 0.0
    %78 = vmatprep.subr.mxu0 0.0
    %79 = vmatpush1.msra.mxu0 0.0
    %80 = vmatprep.subr.mxu0 0.0
    %81 = vmatpush1.msra.mxu0 0.0
    %82 = vmatprep.subr.mxu0 0.0
    %83 = vmatpush1.msra.mxu0 0.0
    %84 = vmatprep.subr.mxu0 0.0
    %85 = vmatpush1.msra.mxu0 0.0
    %86 = vmatprep.subr.mxu0 0.0
    %87 = vmatpush1.msra.mxu0 0.0
    %88 = vmatprep.subr.mxu0 0.0
    %89 = vmatpush1.msra.mxu0 0.0
    %90 = vmatprep.subr.mxu0 0.0
    %91 = vmatpush1.msra.mxu0 0.0
    %92 = vmatprep.subr.mxu0 0.0
    %93 = vmatpush1.msra.mxu0 0.0
    %94 = vmatprep.subr.mxu0 0.0
    %95 = vmatpush1.msra.mxu0 0.0
    %96 = vmatprep.subr.mxu0 0.0
    %97 = vmatpush1.msra.mxu0 0.0
    %98 = vmatprep.subr.mxu0 0.0
    %99 = vmatpush1.msra.mxu0 0.0
    %100 = vmatprep.subr.mxu0 0.0
    %101 = vmatpush1.msra.mxu0 0.0
    %102 = vmatprep.subr.mxu0 0.0
    %103 = vmatpush1.msra.mxu0 0.0
    %104 = vmatprep.subr.mxu0 0.0
    %105 = vmatpush1.msra.mxu0 0.0
    %106 = vmatprep.subr.mxu0 0.0
    %107 = vmatpush1.msra.mxu0 0.0
    %108 = vmatprep.subr.mxu0 0.0
    %109 = vmatpush1.msra.mxu0 0.0
    %110 = vmatprep.subr.mxu0 0.0
    %111 = vmatpush1.msra.mxu0 0.0
    %112 = vmatprep.subr.mxu0 0.0
    %113 = vmatpush1.msra.mxu0 0.0
    %114 = vmatprep.subr.mxu0 0.0
    %115 = vmatpush1.msra.mxu0 0.0
    %116 = vmatprep.mubr.f32.mxu0 0.0
    %117 = vmatmul.mubr.f32.gmra.mrb[0].mxu0 %v50
    %v118 = vpop.f32.mrb[0].mxu0
    %v119 = vadd.f32 %v46, %v118
    %v120 = vpop.f32.mrb[0].mxu0
    %121 = vdwg.mxu0
    %vm122 = vcmask 80896
    %123 = vst.msk [vmem:[#allocation7] sm:$0xff] %vm122, %v119
    // Predicated region
    $region22: #{net1_forward_fused.1} parent=1 // pred_check
      _
    $region23: #{net1_forward_fused.1} parent=1 // pred_check_branch
      %125 = sbr.rel (0) target = $region25
    $region24: #{net1_forward_fused.1} parent=1 // pred_region
      %s127 = ssub.s32 128, 128
      %128 = vsyncadd [#allocation4], %s127
      %s130 = sshll.u32 [#allocation7], 4
      %s131 = int_to_ptr.vmem [resolvable:$true] %s130
      %133 = dma.vmem_to_hbm [thread:$0]  %s131, 128, %s3, [#allocation4]
    $region25: #{net1_forward_fused.1} parent=1 // pred_fallthru
      _
    // Predicated region
    $region26: #{net1_forward_fused.1} parent=1 // pred_check
      _
    $region27: #{net1_forward_fused.1} parent=1 // pred_check_branch
      %135 = sbr.rel (0) target = $region29
    $region28: #{net1_forward_fused.1} parent=1 // pred_region
      %136 = dma.done [#allocation4], 128
    $region29: #{net1_forward_fused.1} parent=1 // pred_fallthru
      _
    %137 = vsyncpa [#allocation3], 1
    %138 = vsyncpa [#allocation6], 1
    %139 = vsyncpa [#allocation4], 1

</llo_original>
